<compile_context>
chip_gen: v5e
topology: v5e:2x2
jax: 0.10.0
libtpu: 0.0.40
codegen_flags: <defaults>
</compile_context>

<pallas_src>
import functools

import jax
import jax.numpy as jnp
from jax.experimental import pallas as pl
from jax.experimental.pallas import tpu as pltpu


def _round_up(x: int, m: int) -> int:
    return ((x + m - 1) // m) * m


def _cosine_head_kernel_direct(x_ref, opt_ref, o_ref):
    # Single K block: compute and write the output tile directly (no scratch).
    o_ref[...] = jnp.dot(
        x_ref[...], opt_ref[...], preferred_element_type=jnp.float32
    ).astype(o_ref.dtype)


def _cosine_head_kernel_acc(x_ref, opt_ref, o_ref, acc_ref):
    # Grid is (L-tiles, B-tiles, K-tiles); K (axis 2) is the reduction axis.
    k = pl.program_id(2)

    @pl.when(k == 0)
    def _():
        acc_ref[...] = jnp.zeros_like(acc_ref)

    # (tm, tk) @ (tk, tn) on the MXU, accumulated in f32.
    acc_ref[...] += jnp.dot(
        x_ref[...], opt_ref[...], preferred_element_type=jnp.float32
    )

    @pl.when(k == pl.num_programs(2) - 1)
    def _():
        o_ref[...] = acc_ref[...].astype(o_ref.dtype)


def _pad_2d(a: jax.Array, rows: int, cols: int, dtype) -> jax.Array:
    """Zero-pad `a` up to (rows, cols) and cast to dtype; no-op copy avoided
    when the shape already matches."""
    a = a.astype(dtype)
    r, c = a.shape
    if r == rows and c == cols:
        return a
    return jnp.pad(a, ((0, rows - r), (0, cols - c)))


@functools.partial(jax.jit, static_argnames=("compute_dtype",))
def cosine_head(x: jax.Array, options: jax.Array,
                compute_dtype=jnp.float32) -> jax.Array:
    """CosineHead.forward: returns x @ options.T.

    x:       (B, D)  image/feature embeddings
    options: (L, D)  label prompt embeddings (the registered buffer)
    compute_dtype: jnp.float32 (exact, default) or jnp.bfloat16
                   (fast MXU operand path; accumulation stays f32).
    returns: (B, L) in x.dtype
    """
    B, D = x.shape
    L, D2 = options.shape
    assert D == D2, "embedding dims must match"

    out_dtype = x.dtype

    # Pre-transpose the fixed buffer once (wrapper-side, outside the kernel)
    # so the kernel runs a canonical (tm,tk)@(tk,tn) MXU matmul.
    opt_t = options.T  # (D, L)

    # --- tile sizes ------------------------------------------------------
    # Lane-dense output: pad L up to a multiple of 128 (unmasked vst).
    Ln = _round_up(L, 128)
    tn = min(512, Ln)
    Ln = _round_up(Ln, tn)

    # Batch tiling: sublane-aligned (multiple of 8).
    Bp = _round_up(B, 8)
    tm = min(128, Bp)
    Bp = _round_up(Bp, tm)

    # K (embedding dim) tiling: keep the whole D as one resident K block when
    # it is modest (typical classification head), otherwise stream 512-chunks.
    if D <= 2048:
        Dp = _round_up(D, 8)
        tk = Dp
    else:
        tk = 512
        Dp = _round_up(D, tk)

    nL, nB, nK = Ln // tn, Bp // tm, Dp // tk

    # Zero-pad inputs only if needed (padding along D does not change the dot
    # product; the extra output rows/cols are sliced off below).
    x_p = _pad_2d(x, Bp, Dp, compute_dtype)
    opt_p = _pad_2d(opt_t, Dp, Ln, compute_dtype)

    itemsize = jnp.dtype(compute_dtype).itemsize
    cost = pl.CostEstimate(
        flops=2 * Bp * Ln * Dp,
        transcendentals=0,
        bytes_accessed=int(x_p.size * itemsize + opt_p.size * itemsize
                           + Bp * Ln * jnp.dtype(out_dtype).itemsize),
    )

    if nK == 1:
        kernel = _cosine_head_kernel_direct
        scratch_shapes = []
    else:
        kernel = _cosine_head_kernel_acc
        scratch_shapes = [pltpu.VMEM((tm, tn), jnp.float32)]

    out_p = pl.pallas_call(
        kernel,
        out_shape=jax.ShapeDtypeStruct((Bp, Ln), out_dtype),
        grid_spec=pltpu.PrefetchScalarGridSpec(
            num_scalar_prefetch=0,
            # (L-tiles, B-tiles, K-tiles): K innermost for the accumulator;
            # B inside L so the options tile stays VMEM-resident across all B
            # steps when nK == 1 (single DMA per L tile of the label matrix).
            grid=(nL, nB, nK),
            in_specs=[
                pl.BlockSpec((tm, tk), lambda j, i, k: (i, k)),  # x
                pl.BlockSpec((tk, tn), lambda j, i, k: (k, j)),  # options.T
            ],
            out_specs=pl.BlockSpec((tm, tn), lambda j, i, k: (i, j)),
            scratch_shapes=scratch_shapes,
        ),
        compiler_params=pltpu.CompilerParams(
            dimension_semantics=("parallel", "parallel", "arbitrary"),
            # Fits comfortably in v7x's 64 MiB physical VMEM; plenty of
            # headroom for double-buffered tiles on v5e/v6e (128 MiB).
            vmem_limit_bytes=48 * 1024 * 1024,
        ),
        cost_estimate=cost,
    )(x_p, opt_p)

    if Bp == B and Ln == L:
        return out_p
    return out_p[:B, :L]


if __name__ == "__main__":
    key = jax.random.PRNGKey(0)
    k_x, k_opt = jax.random.split(key)

    batch, hidden, num_labels = 8, 32, 8

    # Deterministic synthetic "image embeddings" and "label prompt embeddings"
    # (the buffer CosineHead.for_task would fill from a text encoder).
    x = jax.random.normal(k_x, (batch, hidden), dtype=jnp.float32)
    options = jax.random.normal(k_opt, (num_labels, hidden), dtype=jnp.float32)

    ref = x @ options.T

    # Exact-semantics f32 path.
    out_f32 = jax.block_until_ready(cosine_head(x, options))
    assert out_f32.shape == (batch, num_labels)
    assert out_f32.dtype == jnp.float32
    assert jnp.allclose(out_f32, ref, atol=1e-5, rtol=1e-5)

    # Fast bf16-operand path (f32 accumulation) — looser tolerance.
    out_bf16 = jax.block_until_ready(
        cosine_head(x, options, compute_dtype=jnp.bfloat16))
    assert out_bf16.shape == (batch, num_labels)
    assert jnp.allclose(out_bf16, ref, atol=2e-1, rtol=5e-2)

    # Odd (unaligned) shapes to exercise the padding/slicing path.
    k_x2, k_opt2 = jax.random.split(jax.random.PRNGKey(1))
    x2 = jax.random.normal(k_x2, (5, 48), dtype=jnp.float32)
    opt2 = jax.random.normal(k_opt2, (13, 48), dtype=jnp.float32)
    out2 = jax.block_until_ready(cosine_head(x2, opt2))
    assert out2.shape == (5, 13)
    assert jnp.allclose(out2, x2 @ opt2.T, atol=1e-5, rtol=1e-5)

    print("KERNEL_OK")
</pallas_src>

<mosaic_0001>
module attributes {stable_mosaic.version = 11 : i64} {
  func.func @_cosine_head_kernel_direct(%arg0: i32, %arg1: i32, %arg2: i32, %arg3: memref<8x32xf32, #tpu.memory_space<vmem>>, %arg4: memref<32x128xf32, #tpu.memory_space<vmem>>, %arg5: memref<8x128xf32, #tpu.memory_space<vmem>>) attributes {dimension_semantics = [#tpu.dimension_semantics<parallel>, #tpu.dimension_semantics<parallel>, #tpu.dimension_semantics<arbitrary>], iteration_bounds = array<i64: 1, 1, 1>, scalar_prefetch = 0 : i64, scratch_operands = 0 : i64, tpu.core_type = #tpu.core_type<tc>, window_params = [{transform_indices = @transform_0, window_bounds = array<i64: 8, 32>}, {transform_indices = @transform_1, window_bounds = array<i64: 32, 128>}, {transform_indices = @transform_2, window_bounds = array<i64: 8, 128>}]} {
    %c0 = arith.constant 0 : index
    %c0_0 = arith.constant 0 : index
    %0 = vector.load %arg3[%c0, %c0_0] : memref<8x32xf32, #tpu.memory_space<vmem>>, vector<8x32xf32>
    %c0_1 = arith.constant 0 : index
    %c0_2 = arith.constant 0 : index
    %1 = vector.load %arg4[%c0_1, %c0_2] : memref<32x128xf32, #tpu.memory_space<vmem>>, vector<32x128xf32>
    %cst = arith.constant dense<0.000000e+00> : vector<8x128xf32>
    %2 = tpu.matmul %0, %1, %cst {dimension_numbers = #tpu.dot_dimension_numbers<[1], [0], [0], [1], [0, 0, 1, 1], [], []>} : vector<8x32xf32>, vector<32x128xf32>, vector<8x128xf32> -> vector<8x128xf32>
    %c0_3 = arith.constant 0 : index
    %c0_4 = arith.constant 0 : index
    %3 = vector.load %arg5[%c0_3, %c0_4] : memref<8x128xf32, #tpu.memory_space<vmem>>, vector<8x128xf32>
    tpu.vector_store %arg5[%c0_3, %c0_4], %2 {strides = array<i32>} : memref<8x128xf32, #tpu.memory_space<vmem>>, vector<8x128xf32>,
    return
  }
  func.func @transform_0(%arg0: i32, %arg1: i32, %arg2: i32) -> (i32, i32) {
    %c0_i32 = arith.constant 0 : i32
    return %arg1, %arg2 : i32, i32
  }
  func.func @transform_1(%arg0: i32, %arg1: i32, %arg2: i32) -> (i32, i32) {
    %c0_i32 = arith.constant 0 : i32
    return %arg2, %arg0 : i32, i32
  }
  func.func @transform_2(%arg0: i32, %arg1: i32, %arg2: i32) -> (i32, i32) {
    %c0_i32 = arith.constant 0 : i32
    return %arg1, %arg0 : i32, i32
  }
}

</mosaic_0001>

<llo_original>
// kernel: cosine_head.1
$region0: #{cosine_head.1}
  #allocation0 [shape = 'u32[]', space=smem, size = 0x4, offset = 0x4, fixed_abs, tag = 'smem constant byte address 0x4 - core index']
  #allocation1 [shape = 'u32[72,128]{1,0:T(1,128)}', space=vmem, size = 0x9000, scoped, tag = 'internal scratch']
  %s0 = inlined_call_operand.vmem [shape: f32[8,32], index: 0, kind: input, shape index: {}]
  %s1 = inlined_call_operand.vmem [shape: f32[32,128], index: 1, kind: input, shape index: {}]
  %s2 = inlined_call_operand.hbm [shape: f32[8,128], index: 2, kind: output, shape index: {}]
  %s3 = sld [smem:[#allocation0]]
  $region18: #{cosine_head.1} parent=0
    _
  %s5 = ssub.s32 1, %s3
  %s6 = scalar_select 0, %s5, %s3
  $region1: #{cosine_head.1} parent=0
    #allocation2 [shape = 'u8[4096]{0}', space=vmem, size = 0x1000, scoped, tag = 'output window, operand 0, single buffered']
    #allocation3 [shape = 's32[1]{0}', space=sflag, size = 0x4, scoped, tag = 'scoped memory for cosine_head.1']
    %7 = vsyncpa [#allocation3], 0
    // Predicated region
    $region2: #{cosine_head.1} parent=1 // pred_check
      _
    $region3: #{cosine_head.1} parent=1 // pred_check_branch
      %9 = sbr.rel (0) target = $region5
    $region4: #{cosine_head.1} parent=1 // pred_region
      _
    $region5: #{cosine_head.1} parent=1 // pred_fallthru
      _
    // Predicated region
    $region6: #{cosine_head.1} parent=1 // pred_check
      _
    $region7: #{cosine_head.1} parent=1 // pred_check_branch
      %11 = sbr.rel (0) target = $region9
    $region8: #{cosine_head.1} parent=1 // pred_region
      _
    $region9: #{cosine_head.1} parent=1 // pred_fallthru
      _
    %v12 = vld [vmem:[%s0] sm:$0xff]
    %v13 = vld [vmem:[%s1] sm:$0xff]
    %v14 = vld [vmem:[%s1 + $0x8] sm:$0xff]
    %v15 = vld [vmem:[%s1 + $0x10] sm:$0xff]
    %v16 = vld [vmem:[%s1 + $0x18] sm:$0xff]
    %vm17 = vcmask 261120
    %v19 = vsel %vm17, %v12, 0
    %21 = vmatpush.msra.mxu0 0.0
    %22 = vmatpush.msra.mxu0 0.0
    %23 = vmatpush.msra.mxu0 0.0
    %24 = vmatpush.msra.mxu0 0.0
    %25 = vmatpush.msra.mxu0 0.0
    %26 = vmatpush.msra.mxu0 0.0
    %27 = vmatpush.msra.mxu0 0.0
    %28 = vmatpush.msra.mxu0 0.0
    %29 = vmatpush.msra.mxu0 0.0
    %30 = vmatpush.msra.mxu0 0.0
    %31 = vmatpush.msra.mxu0 0.0
    %32 = vmatpush.msra.mxu0 0.0
    %33 = vmatpush.msra.mxu0 %v16
    %34 = vmatpush.msra.mxu0 %v15
    %35 = vmatpush.msra.mxu0 %v14
    %36 = vmatpush.msra.mxu0 %v13
    %37 = vmatmul.f32.gmra.mxu0 %v19
    %v38 = vpop.f32.mrf.mxu0
    %v39 = vadd.f32 0.0, %v38
    %40 = vdwg.mxu0
    %41 = vst [vmem:[#allocation2] sm:$0xff] %v39
    // Predicated region
    $region10: #{cosine_head.1} parent=1 // pred_check
      _
    $region11: #{cosine_head.1} parent=1 // pred_check_branch
      %43 = sbr.rel (0) target = $region13
    $region12: #{cosine_head.1} parent=1 // pred_region
      %45 = vsyncadd [#allocation3], 0
      %s47 = sshll.u32 [#allocation2], 4
      %s48 = int_to_ptr.vmem [resolvable:$true] %s47
      %s49 = sshll.u32 %s2, 4
      %s50 = int_to_ptr.hbm [resolvable:$true] %s49
      %52 = dma.vmem_to_hbm [thread:$0]  %s48, 128, %s50, [#allocation3]
    $region13: #{cosine_head.1} parent=1 // pred_fallthru
      _
    // Predicated region
    $region14: #{cosine_head.1} parent=1 // pred_check
      _
    $region15: #{cosine_head.1} parent=1 // pred_check_branch
      %54 = sbr.rel (0) target = $region17
    $region16: #{cosine_head.1} parent=1 // pred_region
      %56 = dma.done [#allocation3], 128
    $region17: #{cosine_head.1} parent=1 // pred_fallthru
      _
    %57 = vsyncpa [#allocation3], 1

</llo_original>
